<compile_context>
chip_gen: v5e
topology: v5e:2x2
jax: 0.10.0
libtpu: 0.0.40
codegen_flags: <defaults>
</compile_context>

<pallas_src>
import functools

import jax
import jax.numpy as jnp
from jax.experimental import pallas as pl
from jax.experimental.pallas import tpu as pltpu

NEG_SLOPE = 0.01  # F.leaky_relu default


def _lrelu(v):
    return jnp.where(v > 0, v, NEG_SLOPE * v)


# ----------------------------------------------------------------------------
# Kernel
# ----------------------------------------------------------------------------
def nnv2_kernel(
    tx_ref,                               # (TILE_M, t_dim + x_dim)
    wb1_ref, bb1_ref,                     # blockdiag(wt1, wx1): (in, 200), (1, 200)
    wb2_ref, bb2_ref,                     # blockdiag(wt2, wx2): (200, 64), (1, 64)
    w1_ref, b1_ref,                       # Linear1: (64, 50), (1, 50)
    w4_ref, b4_ref,                       # Linear4: (50, 1), (1, 1)
    wpp_ref, bpp_ref,                     # blockdiag(wp, wp): (64, 16), (1, 16)
    o_ref,                                # (TILE_M, 17): [:, :16]=rep16, [:, 16]=out
):
    f32 = jnp.float32
    tx = tx_ref[...]

    # Fused T|X backbone (block-diagonal weights keep the branches independent).
    h200 = _lrelu(jnp.dot(tx, wb1_ref[...], preferred_element_type=f32) + bb1_ref[...])
    h64 = _lrelu(jnp.dot(h200, wb2_ref[...], preferred_element_type=f32) + bb2_ref[...])

    # h64 == cat([t_tmp, x_tmp], dim=1) == the head input.
    hh = _lrelu(jnp.dot(h64, w1_ref[...], preferred_element_type=f32) + b1_ref[...])
    out1 = jnp.dot(hh, w4_ref[...], preferred_element_type=f32) + b4_ref[...]

    # Projection of both representation halves in one dot: (TILE_M, 16).
    r16 = jnp.dot(h64, wpp_ref[...], preferred_element_type=f32) + bpp_ref[...]

    # Single packed output block (one writeback DMA per grid step).
    o_ref[:, 0:16] = r16
    o_ref[:, 16:17] = out1


# ----------------------------------------------------------------------------
# Parameter handling
# ----------------------------------------------------------------------------
def init_params(key, t_dim, x_dim):
    """Deterministic parameter init (same shapes as the PyTorch module)."""

    def linear(k, fan_in, fan_out):
        kw, kb = jax.random.split(k)
        bound = 1.0 / jnp.sqrt(jnp.float32(fan_in))
        # stored already transposed: (in, out); bias as (1, out)
        w = jax.random.uniform(kw, (fan_in, fan_out), jnp.float32, -bound, bound)
        b = jax.random.uniform(kb, (1, fan_out), jnp.float32, -bound, bound)
        return w, b

    ks = jax.random.split(key, 8)
    p = {}
    p["wt1"], p["bt1"] = linear(ks[0], t_dim, 100)   # T_module
    p["wt2"], p["bt2"] = linear(ks[1], 100, 32)
    p["wx1"], p["bx1"] = linear(ks[2], x_dim, 100)   # X_module
    p["wx2"], p["bx2"] = linear(ks[3], 100, 32)
    p["w1"], p["b1"] = linear(ks[4], 64, 50)         # Linear1: in = 2*z_dim = 64
    p["w4"], p["b4"] = linear(ks[5], 50, 1)          # Linear4
    p["wp"], p["bp"] = linear(ks[6], 32, 8)          # proj: 32 -> 8
    return p


def _block_diag(a, b):
    ra, ca = a.shape
    rb, cb = b.shape
    z = jnp.zeros((ra + rb, ca + cb), a.dtype)
    return z.at[:ra, :ca].set(a).at[ra:, ca:].set(b)


def _pack_params(p):
    """Fuse per-branch linears into block-diagonal operands for the kernel."""
    return (
        _block_diag(p["wt1"], p["wx1"]),                       # wb1 (in, 200)
        jnp.concatenate([p["bt1"], p["bx1"]], axis=1),         # bb1 (1, 200)
        _block_diag(p["wt2"], p["wx2"]),                       # wb2 (200, 64)
        jnp.concatenate([p["bt2"], p["bx2"]], axis=1),         # bb2 (1, 64)
        p["w1"], p["b1"],                                      # (64, 50), (1, 50)
        p["w4"], p["b4"],                                      # (50, 1), (1, 1)
        _block_diag(p["wp"], p["wp"]),                         # wpp (64, 16)
        jnp.concatenate([p["bp"], p["bp"]], axis=1),           # bpp (1, 16)
    )


# ----------------------------------------------------------------------------
# Forward
# ----------------------------------------------------------------------------
@functools.partial(jax.jit, static_argnames=("tile_m",))
def nnv2_forward(t, x, params, tile_m=512):
    if t.ndim == 1:
        t = t.reshape(-1, 1)
    if x.ndim == 1:
        x = x.reshape(-1, 1)
    t = t.astype(jnp.float32)
    x = x.astype(jnp.float32)

    size = t.shape[0]
    in_dim = t.shape[1] + x.shape[1]
    tx = jnp.concatenate([t, x], axis=1)                       # (size, in_dim)

    # Batch tile: sublane-aligned, capped (keeps v7x's 64 MiB VMEM comfortable).
    tm = max(8, min(tile_m, ((size + 7) // 8) * 8))
    tm = ((tm + 7) // 8) * 8
    padded = ((size + tm - 1) // tm) * tm
    if padded != size:
        tx = jnp.pad(tx, ((0, padded - size), (0, 0)))

    weights = _pack_params(params)
    const_map = lambda i: (0, 0)                               # weights stay resident

    flops = 2 * padded * (in_dim * 200 + 200 * 64 + 64 * 50 + 64 * 16 + 50 * 1)
    bytes_accessed = 4 * (padded * (in_dim + 17)
                          + sum(int(w.size) for w in weights))

    combined = pl.pallas_call(
        nnv2_kernel,
        out_shape=jax.ShapeDtypeStruct((padded, 17), jnp.float32),
        grid=(padded // tm,),
        in_specs=[pl.BlockSpec((tm, in_dim), lambda i: (i, 0))]
        + [pl.BlockSpec(w.shape, const_map) for w in weights],
        out_specs=pl.BlockSpec((tm, 17), lambda i: (i, 0)),
        compiler_params=pltpu.CompilerParams(
            dimension_semantics=("parallel",),
        ),
        cost_estimate=pl.CostEstimate(
            flops=flops, transcendentals=0, bytes_accessed=bytes_accessed
        ),
    )(tx, *weights)

    r16 = combined[:size, 0:16]
    out = combined[:size, 16:17]                               # (size, 1)
    # dim=0 concat of the two projected halves (free layout plumbing in XLA).
    rep = jnp.concatenate([r16[:, :8], r16[:, 8:]], axis=0)    # (2*size, 8)
    return rep, out


# ----------------------------------------------------------------------------
# Pure-JAX reference (mirrors the PyTorch forward)
# ----------------------------------------------------------------------------
def nnv2_reference(t, x, params):
    if t.ndim == 1:
        t = t.reshape(-1, 1)
    if x.ndim == 1:
        x = x.reshape(-1, 1)
    t = t.astype(jnp.float32)
    x = x.astype(jnp.float32)
    lr = _lrelu
    t_tmp = lr(lr(t @ params["wt1"] + params["bt1"]) @ params["wt2"] + params["bt2"])
    x_tmp = lr(lr(x @ params["wx1"] + params["bx1"]) @ params["wx2"] + params["bx2"])
    representation = jnp.concatenate([t_tmp, x_tmp], axis=0)
    size = t.shape[0]
    inputs = jnp.concatenate([representation[:size], representation[size:]], axis=1)
    out = lr(inputs @ params["w1"] + params["b1"]) @ params["w4"] + params["b4"]
    rep = representation @ params["wp"] + params["bp"]
    return rep, out


if __name__ == "__main__":
    key = jax.random.PRNGKey(0)
    k_t, k_x, k_p, k_t2, k_x2 = jax.random.split(key, 5)

    # Small case matching the module's intent (t_dim=1, x_dim=4).
    size, t_dim, x_dim = 8, 1, 4
    t = jax.random.normal(k_t, (size,), jnp.float32)           # 1-D t path
    x = jax.random.normal(k_x, (size, x_dim), jnp.float32)
    params = init_params(k_p, t_dim, x_dim)

    rep, out = nnv2_forward(t, x, params)
    jax.block_until_ready((rep, out))
    rep_r, out_r = nnv2_reference(t, x, params)
    assert rep.shape == (2 * size, 8) and out.shape == (size, 1)
    assert jnp.allclose(rep, rep_r, atol=1e-5, rtol=1e-5)
    assert jnp.allclose(out, out_r, atol=1e-5, rtol=1e-5)

    # Larger, non-multiple-of-8 batch exercising padding and a multi-tile grid.
    size2 = 300
    t2 = jax.random.normal(k_t2, (size2, t_dim), jnp.float32)
    x2 = jax.random.normal(k_x2, (size2, x_dim), jnp.float32)
    rep2, out2 = nnv2_forward(t2, x2, params, tile_m=128)
    jax.block_until_ready((rep2, out2))
    rep2_r, out2_r = nnv2_reference(t2, x2, params)
    assert rep2.shape == (2 * size2, 8) and out2.shape == (size2, 1)
    assert jnp.allclose(rep2, rep2_r, atol=1e-5, rtol=1e-5)
    assert jnp.allclose(out2, out2_r, atol=1e-5, rtol=1e-5)

    print("KERNEL_OK")
</pallas_src>

<mosaic_0001>
module attributes {stable_mosaic.version = 11 : i64} {
  func.func @nnv2_kernel(%arg0: i32, %arg1: memref<8x5xf32, #tpu.memory_space<vmem>>, %arg2: memref<5x200xf32, #tpu.memory_space<vmem>>, %arg3: memref<1x200xf32, #tpu.memory_space<vmem>>, %arg4: memref<200x64xf32, #tpu.memory_space<vmem>>, %arg5: memref<1x64xf32, #tpu.memory_space<vmem>>, %arg6: memref<64x50xf32, #tpu.memory_space<vmem>>, %arg7: memref<1x50xf32, #tpu.memory_space<vmem>>, %arg8: memref<50x1xf32, #tpu.memory_space<vmem>>, %arg9: memref<1x1xf32, #tpu.memory_space<vmem>>, %arg10: memref<64x16xf32, #tpu.memory_space<vmem>>, %arg11: memref<1x16xf32, #tpu.memory_space<vmem>>, %arg12: memref<8x17xf32, #tpu.memory_space<vmem>>) attributes {dimension_semantics = [#tpu.dimension_semantics<parallel>], iteration_bounds = array<i64: 1>, scalar_prefetch = 0 : i64, scratch_operands = 0 : i64, tpu.core_type = #tpu.core_type<tc>, window_params = [{transform_indices = @transform_0, window_bounds = array<i64: 8, 5>}, {pipeline_mode = #tpu.pipeline_mode<synchronous>, transform_indices = @transform_1, window_bounds = array<i64: 5, 200>}, {pipeline_mode = #tpu.pipeline_mode<synchronous>, transform_indices = @transform_2, window_bounds = array<i64: 1, 200>}, {pipeline_mode = #tpu.pipeline_mode<synchronous>, transform_indices = @transform_3, window_bounds = array<i64: 200, 64>}, {pipeline_mode = #tpu.pipeline_mode<synchronous>, transform_indices = @transform_4, window_bounds = array<i64: 1, 64>}, {pipeline_mode = #tpu.pipeline_mode<synchronous>, transform_indices = @transform_5, window_bounds = array<i64: 64, 50>}, {pipeline_mode = #tpu.pipeline_mode<synchronous>, transform_indices = @transform_6, window_bounds = array<i64: 1, 50>}, {pipeline_mode = #tpu.pipeline_mode<synchronous>, transform_indices = @transform_7, window_bounds = array<i64: 50, 1>}, {pipeline_mode = #tpu.pipeline_mode<synchronous>, transform_indices = @transform_8, window_bounds = array<i64: 1, 1>}, {pipeline_mode = #tpu.pipeline_mode<synchronous>, transform_indices = @transform_9, window_bounds = array<i64: 64, 16>}, {pipeline_mode = #tpu.pipeline_mode<synchronous>, transform_indices = @transform_10, window_bounds = array<i64: 1, 16>}, {transform_indices = @transform_11, window_bounds = array<i64: 8, 17>}]} {
    %c0 = arith.constant 0 : index
    %c0_0 = arith.constant 0 : index
    %0 = vector.load %arg1[%c0, %c0_0] : memref<8x5xf32, #tpu.memory_space<vmem>>, vector<8x5xf32>
    %c0_1 = arith.constant 0 : index
    %c0_2 = arith.constant 0 : index
    %1 = vector.load %arg2[%c0_1, %c0_2] : memref<5x200xf32, #tpu.memory_space<vmem>>, vector<5x200xf32>
    %cst = arith.constant dense<0.000000e+00> : vector<8x200xf32>
    %2 = tpu.matmul %0, %1, %cst {dimension_numbers = #tpu.dot_dimension_numbers<[1], [0], [0], [1], [0, 0, 1, 1], [], []>} : vector<8x5xf32>, vector<5x200xf32>, vector<8x200xf32> -> vector<8x200xf32>
    %c0_3 = arith.constant 0 : index
    %c0_4 = arith.constant 0 : index
    %3 = vector.load %arg3[%c0_3, %c0_4] : memref<1x200xf32, #tpu.memory_space<vmem>>, vector<1x200xf32>
    %4 = vector.broadcast %3 : vector<1x200xf32> to vector<8x200xf32>
    %5 = arith.addf %2, %4 : vector<8x200xf32>
    %cst_5 = arith.constant 0.000000e+00 : f32
    %6 = vector.broadcast %cst_5 : f32 to vector<8x200xf32>
    %7 = arith.cmpf ogt, %5, %6 : vector<8x200xf32>
    %cst_6 = arith.constant 0.00999999977 : f32
    %8 = vector.broadcast %cst_6 : f32 to vector<8x200xf32>
    %9 = arith.mulf %8, %5 : vector<8x200xf32>
    %10 = arith.select %7, %5, %9 : vector<8x200xi1>, vector<8x200xf32>
    %c0_7 = arith.constant 0 : index
    %c0_8 = arith.constant 0 : index
    %11 = vector.load %arg4[%c0_7, %c0_8] : memref<200x64xf32, #tpu.memory_space<vmem>>, vector<200x64xf32>
    %cst_9 = arith.constant dense<0.000000e+00> : vector<8x64xf32>
    %12 = tpu.matmul %10, %11, %cst_9 {dimension_numbers = #tpu.dot_dimension_numbers<[1], [0], [0], [1], [0, 0, 1, 1], [], []>} : vector<8x200xf32>, vector<200x64xf32>, vector<8x64xf32> -> vector<8x64xf32>
    %c0_10 = arith.constant 0 : index
    %c0_11 = arith.constant 0 : index
    %13 = vector.load %arg5[%c0_10, %c0_11] : memref<1x64xf32, #tpu.memory_space<vmem>>, vector<1x64xf32>
    %14 = vector.broadcast %13 : vector<1x64xf32> to vector<8x64xf32>
    %15 = arith.addf %12, %14 : vector<8x64xf32>
    %cst_12 = arith.constant 0.000000e+00 : f32
    %16 = vector.broadcast %cst_12 : f32 to vector<8x64xf32>
    %17 = arith.cmpf ogt, %15, %16 : vector<8x64xf32>
    %cst_13 = arith.constant 0.00999999977 : f32
    %18 = vector.broadcast %cst_13 : f32 to vector<8x64xf32>
    %19 = arith.mulf %18, %15 : vector<8x64xf32>
    %20 = arith.select %17, %15, %19 : vector<8x64xi1>, vector<8x64xf32>
    %c0_14 = arith.constant 0 : index
    %c0_15 = arith.constant 0 : index
    %21 = vector.load %arg6[%c0_14, %c0_15] : memref<64x50xf32, #tpu.memory_space<vmem>>, vector<64x50xf32>
    %cst_16 = arith.constant dense<0.000000e+00> : vector<8x50xf32>
    %22 = tpu.matmul %20, %21, %cst_16 {dimension_numbers = #tpu.dot_dimension_numbers<[1], [0], [0], [1], [0, 0, 1, 1], [], []>} : vector<8x64xf32>, vector<64x50xf32>, vector<8x50xf32> -> vector<8x50xf32>
    %c0_17 = arith.constant 0 : index
    %c0_18 = arith.constant 0 : index
    %23 = vector.load %arg7[%c0_17, %c0_18] : memref<1x50xf32, #tpu.memory_space<vmem>>, vector<1x50xf32>
    %24 = vector.broadcast %23 : vector<1x50xf32> to vector<8x50xf32>
    %25 = arith.addf %22, %24 : vector<8x50xf32>
    %cst_19 = arith.constant 0.000000e+00 : f32
    %26 = vector.broadcast %cst_19 : f32 to vector<8x50xf32>
    %27 = arith.cmpf ogt, %25, %26 : vector<8x50xf32>
    %cst_20 = arith.constant 0.00999999977 : f32
    %28 = vector.broadcast %cst_20 : f32 to vector<8x50xf32>
    %29 = arith.mulf %28, %25 : vector<8x50xf32>
    %30 = arith.select %27, %25, %29 : vector<8x50xi1>, vector<8x50xf32>
    %c0_21 = arith.constant 0 : index
    %c0_22 = arith.constant 0 : index
    %31 = vector.load %arg8[%c0_21, %c0_22] : memref<50x1xf32, #tpu.memory_space<vmem>>, vector<50x1xf32>
    %cst_23 = arith.constant dense<0.000000e+00> : vector<8x1xf32>
    %32 = tpu.matmul %30, %31, %cst_23 {dimension_numbers = #tpu.dot_dimension_numbers<[1], [0], [0], [1], [0, 0, 1, 1], [], []>} : vector<8x50xf32>, vector<50x1xf32>, vector<8x1xf32> -> vector<8x1xf32>
    %c0_24 = arith.constant 0 : index
    %c0_25 = arith.constant 0 : index
    %33 = vector.load %arg9[%c0_24, %c0_25] : memref<1x1xf32, #tpu.memory_space<vmem>>, vector<1x1xf32>
    %34 = vector.broadcast %33 : vector<1x1xf32> to vector<8x1xf32>
    %35 = arith.addf %32, %34 : vector<8x1xf32>
    %c0_26 = arith.constant 0 : index
    %c0_27 = arith.constant 0 : index
    %36 = vector.load %arg10[%c0_26, %c0_27] : memref<64x16xf32, #tpu.memory_space<vmem>>, vector<64x16xf32>
    %cst_28 = arith.constant dense<0.000000e+00> : vector<8x16xf32>
    %37 = tpu.matmul %20, %36, %cst_28 {dimension_numbers = #tpu.dot_dimension_numbers<[1], [0], [0], [1], [0, 0, 1, 1], [], []>} : vector<8x64xf32>, vector<64x16xf32>, vector<8x16xf32> -> vector<8x16xf32>
    %c0_29 = arith.constant 0 : index
    %c0_30 = arith.constant 0 : index
    %38 = vector.load %arg11[%c0_29, %c0_30] : memref<1x16xf32, #tpu.memory_space<vmem>>, vector<1x16xf32>
    %39 = vector.broadcast %38 : vector<1x16xf32> to vector<8x16xf32>
    %40 = arith.addf %37, %39 : vector<8x16xf32>
    %c0_31 = arith.constant 0 : index
    %c0_32 = arith.constant 0 : index
    %41 = vector.load %arg12[%c0_31, %c0_32] : memref<8x17xf32, #tpu.memory_space<vmem>>, vector<8x16xf32>
    tpu.vector_store %arg12[%c0_31, %c0_32], %40 {strides = array<i32>} : memref<8x17xf32, #tpu.memory_space<vmem>>, vector<8x16xf32>,
    %c0_33 = arith.constant 0 : index
    %c16 = arith.constant 16 : index
    %42 = vector.load %arg12[%c0_33, %c16] : memref<8x17xf32, #tpu.memory_space<vmem>>, vector<8x1xf32>
    tpu.vector_store %arg12[%c0_33, %c16], %35 {strides = array<i32>} : memref<8x17xf32, #tpu.memory_space<vmem>>, vector<8x1xf32>,
    return
  }
  func.func @transform_0(%arg0: i32) -> (i32, i32) {
    %c0_i32 = arith.constant 0 : i32
    %c0_i32_0 = arith.constant 0 : i32
    return %arg0, %c0_i32 : i32, i32
  }
  func.func @transform_1(%arg0: i32) -> (i32, i32) {
    %c0_i32 = arith.constant 0 : i32
    %c0_i32_0 = arith.constant 0 : i32
    %c0_i32_1 = arith.constant 0 : i32
    return %c0_i32, %c0_i32_0 : i32, i32
  }
  func.func @transform_2(%arg0: i32) -> (i32, i32) {
    %c0_i32 = arith.constant 0 : i32
    %c0_i32_0 = arith.constant 0 : i32
    %c0_i32_1 = arith.constant 0 : i32
    return %c0_i32, %c0_i32_0 : i32, i32
  }
  func.func @transform_3(%arg0: i32) -> (i32, i32) {
    %c0_i32 = arith.constant 0 : i32
    %c0_i32_0 = arith.constant 0 : i32
    %c0_i32_1 = arith.constant 0 : i32
    return %c0_i32, %c0_i32_0 : i32, i32
  }
  func.func @transform_4(%arg0: i32) -> (i32, i32) {
    %c0_i32 = arith.constant 0 : i32
    %c0_i32_0 = arith.constant 0 : i32
    %c0_i32_1 = arith.constant 0 : i32
    return %c0_i32, %c0_i32_0 : i32, i32
  }
  func.func @transform_5(%arg0: i32) -> (i32, i32) {
    %c0_i32 = arith.constant 0 : i32
    %c0_i32_0 = arith.constant 0 : i32
    %c0_i32_1 = arith.constant 0 : i32
    return %c0_i32, %c0_i32_0 : i32, i32
  }
  func.func @transform_6(%arg0: i32) -> (i32, i32) {
    %c0_i32 = arith.constant 0 : i32
    %c0_i32_0 = arith.constant 0 : i32
    %c0_i32_1 = arith.constant 0 : i32
    return %c0_i32, %c0_i32_0 : i32, i32
  }
  func.func @transform_7(%arg0: i32) -> (i32, i32) {
    %c0_i32 = arith.constant 0 : i32
    %c0_i32_0 = arith.constant 0 : i32
    %c0_i32_1 = arith.constant 0 : i32
    return %c0_i32, %c0_i32_0 : i32, i32
  }
  func.func @transform_8(%arg0: i32) -> (i32, i32) {
    %c0_i32 = arith.constant 0 : i32
    %c0_i32_0 = arith.constant 0 : i32
    %c0_i32_1 = arith.constant 0 : i32
    return %c0_i32, %c0_i32_0 : i32, i32
  }
  func.func @transform_9(%arg0: i32) -> (i32, i32) {
    %c0_i32 = arith.constant 0 : i32
    %c0_i32_0 = arith.constant 0 : i32
    %c0_i32_1 = arith.constant 0 : i32
    return %c0_i32, %c0_i32_0 : i32, i32
  }
  func.func @transform_10(%arg0: i32) -> (i32, i32) {
    %c0_i32 = arith.constant 0 : i32
    %c0_i32_0 = arith.constant 0 : i32
    %c0_i32_1 = arith.constant 0 : i32
    return %c0_i32, %c0_i32_0 : i32, i32
  }
  func.func @transform_11(%arg0: i32) -> (i32, i32) {
    %c0_i32 = arith.constant 0 : i32
    %c0_i32_0 = arith.constant 0 : i32
    return %arg0, %c0_i32 : i32, i32
  }
}

</mosaic_0001>

<llo_original>
// kernel: nnv2_forward.1
$region0: #{nnv2_forward.1}
  #allocation0 [shape = 'u32[]', space=smem, size = 0x4, offset = 0x4, fixed_abs, tag = 'smem constant byte address 0x4 - core index']
  #allocation1 [shape = 'u32[72,128]{1,0:T(1,128)}', space=vmem, size = 0x9000, scoped, tag = 'internal scratch']
  #allocation2 [shape = 'f32[1,1]{1,0:T(1,128)S(1)}', space=vmem, size = 0x200, scoped, tag = 'scoped memory for nnv2_forward.1']
  %s0 = inlined_call_operand.vmem [shape: f32[8,5], index: 0, kind: input, shape index: {}]
  %s1 = inlined_call_operand.vmem [shape: f32[5,200], index: 1, kind: input, shape index: {}]
  %s2 = inlined_call_operand.vmem [shape: f32[1,200], index: 2, kind: input, shape index: {}]
  %s3 = inlined_call_operand.vmem [shape: f32[200,64], index: 3, kind: input, shape index: {}]
  %s4 = inlined_call_operand.vmem [shape: f32[1,64], index: 4, kind: input, shape index: {}]
  %s5 = inlined_call_operand.vmem [shape: f32[64,50], index: 5, kind: input, shape index: {}]
  %s6 = inlined_call_operand.vmem [shape: f32[1,50], index: 6, kind: input, shape index: {}]
  %s7 = inlined_call_operand.vmem [shape: f32[50,1], index: 7, kind: input, shape index: {}]
  %s8 = inlined_call_operand.<no memory space> [shape: f32[1,1], index: 8, kind: input, shape index: {}]
  %s9 = inlined_call_operand.vmem [shape: f32[64,16], index: 9, kind: input, shape index: {}]
  %s10 = inlined_call_operand.vmem [shape: f32[1,16], index: 10, kind: input, shape index: {}]
  %s11 = inlined_call_operand.vmem [shape: f32[8,17], index: 11, kind: output, shape index: {}]
  %s12 = sld [smem:[#allocation0]]
  $region54: #{nnv2_forward.1} parent=0
    _
  %s14 = ssub.s32 1, %s12
  %s15 = scalar_select 0, %s14, %s12
  %v16 = vstv %s8
  %17 = vst [vmem:[#allocation2] sm:$0x1] %v16
  // Predicated region
  $region2: #{nnv2_forward.1} parent=0 // pred_check
    _
  $region3: #{nnv2_forward.1} parent=0 // pred_check_branch
    %19 = sbr.rel (0) target = $region5
  $region4: #{nnv2_forward.1} parent=0 // pred_region
    _
  $region5: #{nnv2_forward.1} parent=0 // pred_fallthru
    _
  // Predicated region
  $region6: #{nnv2_forward.1} parent=0 // pred_check
    _
  $region7: #{nnv2_forward.1} parent=0 // pred_check_branch
    %21 = sbr.rel (0) target = $region9
  $region8: #{nnv2_forward.1} parent=0 // pred_region
    _
  $region9: #{nnv2_forward.1} parent=0 // pred_fallthru
    _
  // Predicated region
  $region10: #{nnv2_forward.1} parent=0 // pred_check
    _
  $region11: #{nnv2_forward.1} parent=0 // pred_check_branch
    %23 = sbr.rel (0) target = $region13
  $region12: #{nnv2_forward.1} parent=0 // pred_region
    _
  $region13: #{nnv2_forward.1} parent=0 // pred_fallthru
    _
  // Predicated region
  $region14: #{nnv2_forward.1} parent=0 // pred_check
    _
  $region15: #{nnv2_forward.1} parent=0 // pred_check_branch
    %25 = sbr.rel (0) target = $region17
  $region16: #{nnv2_forward.1} parent=0 // pred_region
    _
  $region17: #{nnv2_forward.1} parent=0 // pred_fallthru
    _
  // Predicated region
  $region18: #{nnv2_forward.1} parent=0 // pred_check
    _
  $region19: #{nnv2_forward.1} parent=0 // pred_check_branch
    %27 = sbr.rel (0) target = $region21
  $region20: #{nnv2_forward.1} parent=0 // pred_region
    _
  $region21: #{nnv2_forward.1} parent=0 // pred_fallthru
    _
  // Predicated region
  $region22: #{nnv2_forward.1} parent=0 // pred_check
    _
  $region23: #{nnv2_forward.1} parent=0 // pred_check_branch
    %29 = sbr.rel (0) target = $region25
  $region24: #{nnv2_forward.1} parent=0 // pred_region
    _
  $region25: #{nnv2_forward.1} parent=0 // pred_fallthru
    _
  // Predicated region
  $region26: #{nnv2_forward.1} parent=0 // pred_check
    _
  $region27: #{nnv2_forward.1} parent=0 // pred_check_branch
    %31 = sbr.rel (0) target = $region29
  $region28: #{nnv2_forward.1} parent=0 // pred_region
    _
  $region29: #{nnv2_forward.1} parent=0 // pred_fallthru
    _
  // Predicated region
  $region30: #{nnv2_forward.1} parent=0 // pred_check
    _
  $region31: #{nnv2_forward.1} parent=0 // pred_check_branch
    %33 = sbr.rel (0) target = $region33
  $region32: #{nnv2_forward.1} parent=0 // pred_region
    _
  $region33: #{nnv2_forward.1} parent=0 // pred_fallthru
    _
  // Predicated region
  $region34: #{nnv2_forward.1} parent=0 // pred_check
    _
  $region35: #{nnv2_forward.1} parent=0 // pred_check_branch
    %35 = sbr.rel (0) target = $region37
  $region36: #{nnv2_forward.1} parent=0 // pred_region
    _
  $region37: #{nnv2_forward.1} parent=0 // pred_fallthru
    _
  // Predicated region
  $region38: #{nnv2_forward.1} parent=0 // pred_check
    _
  $region39: #{nnv2_forward.1} parent=0 // pred_check_branch
    %37 = sbr.rel (0) target = $region41
  $region40: #{nnv2_forward.1} parent=0 // pred_region
    _
  $region41: #{nnv2_forward.1} parent=0 // pred_fallthru
    _
  // Predicated region
  $region42: #{nnv2_forward.1} parent=0 // pred_check
    _
  $region43: #{nnv2_forward.1} parent=0 // pred_check_branch
    %39 = sbr.rel (0) target = $region45
  $region44: #{nnv2_forward.1} parent=0 // pred_region
    _
  $region45: #{nnv2_forward.1} parent=0 // pred_fallthru
    _
  %v40 = vld [vmem:[%s0] sm:$0xff]
  %v41 = vld [vmem:[%s1] sm:$0x1f]
  %v42 = vld [vmem:[%s1 + $0x8] sm:$0x1f]
  %v43 = vld [vmem:[%s2] sm:$0x3]
  %v45 = vperm.slane %v43, 0
  %v46 = vperm.slane %v43, 1
  %vm49 = vcmask 39936
  %v51 = vsel %vm49, %v40, 0
  %vm53 = vcmask 1044480
  %v55 = vsel %vm53, %v41, 0
  %v58 = vsel %vm53, %v42, 0
  %60 = vmatpush.msra.mxu0 0.0
  %61 = vmatpush.msra.mxu0 0.0
  %62 = vmatpush.msra.mxu0 0.0
  %63 = vmatpush.msra.mxu0 0.0
  %64 = vmatpush.msra.mxu0 0.0
  %65 = vmatpush.msra.mxu0 0.0
  %66 = vmatpush.msra.mxu0 0.0
  %67 = vmatpush.msra.mxu0 0.0
  %68 = vmatpush.msra.mxu0 0.0
  %69 = vmatpush.msra.mxu0 0.0
  %70 = vmatpush.msra.mxu0 0.0
  %71 = vmatpush.msra.mxu0 0.0
  %72 = vmatpush.msra.mxu0 0.0
  %73 = vmatpush.msra.mxu0 0.0
  %74 = vmatpush.msra.mxu0 0.0
  %75 = vmatpush.msra.mxu0 %v55
  %76 = vmatmul.f32.gmra.mxu0 %v51
  %v77 = vpop.f32.mrf.mxu0
  %v78 = vadd.f32 %v45, %v77
  %79 = vdwg.mxu0
  %80 = vmatpush.msra.mxu0 0.0
  %81 = vmatpush.msra.mxu0 0.0
  %82 = vmatpush.msra.mxu0 0.0
  %83 = vmatpush.msra.mxu0 0.0
  %84 = vmatpush.msra.mxu0 0.0
  %85 = vmatpush.msra.mxu0 0.0
  %86 = vmatpush.msra.mxu0 0.0
  %87 = vmatpush.msra.mxu0 0.0
  %88 = vmatpush.msra.mxu0 0.0
  %89 = vmatpush.msra.mxu0 0.0
  %90 = vmatpush.msra.mxu0 0.0
  %91 = vmatpush.msra.mxu0 0.0
  %92 = vmatpush.msra.mxu0 0.0
  %93 = vmatpush.msra.mxu0 0.0
  %94 = vmatpush.msra.mxu0 0.0
  %95 = vmatpush.msra.mxu0 %v58
  %96 = vmatmul.f32.gmra.mxu0 %v51
  %v97 = vpop.f32.mrf.mxu0
  %v98 = vadd.f32 %v46, %v97
  %99 = vdwg.mxu0
  %vm100 = vcmp.gt.f32.partialorder %v78, 0.0
  %vm101 = vcmp.gt.f32.partialorder %v98, 0.0
  %v102 = vmul.f32 %v78, 0.01
  %v103 = vmul.f32 %v98, 0.01
  %v104 = vsel %vm100, %v78, %v102
  %v105 = vsel %vm101, %v98, %v103
  %v106 = vld [vmem:[%s3] sm:$0xff]
  %v107 = vld [vmem:[%s3 + $0x8] sm:$0xff]
  %v108 = vld [vmem:[%s3 + $0x10] sm:$0xff]
  %v109 = vld [vmem:[%s3 + $0x18] sm:$0xff]
  %v110 = vld [vmem:[%s3 + $0x20] sm:$0xff]
  %v111 = vld [vmem:[%s3 + $0x28] sm:$0xff]
  %v112 = vld [vmem:[%s3 + $0x30] sm:$0xff]
  %v113 = vld [vmem:[%s3 + $0x38] sm:$0xff]
  %v114 = vld [vmem:[%s3 + $0x40] sm:$0xff]
  %v115 = vld [vmem:[%s3 + $0x48] sm:$0xff]
  %v116 = vld [vmem:[%s3 + $0x50] sm:$0xff]
  %v117 = vld [vmem:[%s3 + $0x58] sm:$0xff]
  %v118 = vld [vmem:[%s3 + $0x60] sm:$0xff]
  %v119 = vld [vmem:[%s3 + $0x68] sm:$0xff]
  %v120 = vld [vmem:[%s3 + $0x70] sm:$0xff]
  %v121 = vld [vmem:[%s3 + $0x78] sm:$0xff]
  %v122 = vld [vmem:[%s3 + $0x80] sm:$0xff]
  %v123 = vld [vmem:[%s3 + $0x88] sm:$0xff]
  %v124 = vld [vmem:[%s3 + $0x90] sm:$0xff]
  %v125 = vld [vmem:[%s3 + $0x98] sm:$0xff]
  %v126 = vld [vmem:[%s3 + $0xa0] sm:$0xff]
  %v127 = vld [vmem:[%s3 + $0xa8] sm:$0xff]
  %v128 = vld [vmem:[%s3 + $0xb0] sm:$0xff]
  %v129 = vld [vmem:[%s3 + $0xb8] sm:$0xff]
  %v130 = vld [vmem:[%s3 + $0xc0] sm:$0xff]
  %v131 = vld [vmem:[%s4] sm:$0x1]
  %v133 = vperm.slane %v131, 0
  %vm135 = vcmask 588800
  %v137 = vsel %vm135, %v105, 0
  %139 = vmatpush.msra.mxu0 %v121
  %140 = vmatpush.msra.mxu0 %v120
  %141 = vmatpush.msra.mxu0 %v119
  %142 = vmatpush.msra.mxu0 %v118
  %143 = vmatpush.msra.mxu0 %v117
  %144 = vmatpush.msra.mxu0 %v116
  %145 = vmatpush.msra.mxu0 %v115
  %146 = vmatpush.msra.mxu0 %v114
  %147 = vmatpush.msra.mxu0 %v113
  %148 = vmatpush.msra.mxu0 %v112
  %149 = vmatpush.msra.mxu0 %v111
  %150 = vmatpush.msra.mxu0 %v110
  %151 = vmatpush.msra.mxu0 %v109
  %152 = vmatpush.msra.mxu0 %v108
  %153 = vmatpush.msra.mxu0 %v107
  %154 = vmatpush.msra.mxu0 %v106
  %155 = vmatmul.f32.gmra.mxu0 %v104
  %v156 = vpop.f32.mrf.mxu0
  %v157 = vadd.f32 %v133, %v156
  %158 = vdwg.mxu0
  %159 = vmatpush.msra.mxu0 0.0
  %160 = vmatpush.msra.mxu0 0.0
  %161 = vmatpush.msra.mxu0 0.0
  %162 = vmatpush.msra.mxu0 0.0
  %163 = vmatpush.msra.mxu0 0.0
  %164 = vmatpush.msra.mxu0 0.0
  %165 = vmatpush.msra.mxu0 0.0
  %166 = vmatpush.msra.mxu0 %v130
  %167 = vmatpush.msra.mxu0 %v129
  %168 = vmatpush.msra.mxu0 %v128
  %169 = vmatpush.msra.mxu0 %v127
  %170 = vmatpush.msra.mxu0 %v126
  %171 = vmatpush.msra.mxu0 %v125
  %172 = vmatpush.msra.mxu0 %v124
  %173 = vmatpush.msra.mxu0 %v123
  %174 = vmatpush.msra.mxu0 %v122
  %175 = vmatmul.f32.gmra.mxu0 %v137
  %v176 = vpop.f32.mrf.mxu0
  %v177 = vadd.f32 %v157, %v176
  %178 = vdwg.mxu0
  %vm179 = vcmp.gt.f32.partialorder %v177, 0.0
  %v180 = vmul.f32 %v177, 0.01
  %v181 = vsel %vm179, %v177, %v180
  %v182 = vld [vmem:[%s5] sm:$0xff]
  %v183 = vld [vmem:[%s5 + $0x8] sm:$0xff]
  %v184 = vld [vmem:[%s5 + $0x10] sm:$0xff]
  %v185 = vld [vmem:[%s5 + $0x18] sm:$0xff]
  %v186 = vld [vmem:[%s5 + $0x20] sm:$0xff]
  %v187 = vld [vmem:[%s5 + $0x28] sm:$0xff]
  %v188 = vld [vmem:[%s5 + $0x30] sm:$0xff]
  %v189 = vld [vmem:[%s5 + $0x38] sm:$0xff]
  %v190 = vld [vmem:[%s6] sm:$0x1]
  %v192 = vperm.slane %v190, 0
  %vm194 = vcmask 523264
  %v196 = vsel %vm194, %v181, 0
  %198 = vmatpush.msra.mxu0 0.0
  %199 = vmatpush.msra.mxu0 0.0
  %200 = vmatpush.msra.mxu0 0.0
  %201 = vmatpush.msra.mxu0 0.0
  %202 = vmatpush.msra.mxu0 0.0
  %203 = vmatpush.msra.mxu0 0.0
  %204 = vmatpush.msra.mxu0 0.0
  %205 = vmatpush.msra.mxu0 0.0
  %206 = vmatpush.msra.mxu0 %v189
  %207 = vmatpush.msra.mxu0 %v188
  %208 = vmatpush.msra.mxu0 %v187
  %209 = vmatpush.msra.mxu0 %v186
  %210 = vmatpush.msra.mxu0 %v185
  %211 = vmatpush.msra.mxu0 %v184
  %212 = vmatpush.msra.mxu0 %v183
  %213 = vmatpush.msra.mxu0 %v182
  %214 = vmatmul.f32.gmra.mxu0 %v196
  %v215 = vpop.f32.mrf.mxu0
  %v216 = vadd.f32 %v192, %v215
  %217 = vdwg.mxu0
  %vm218 = vcmp.gt.f32.partialorder %v216, 0.0
  %v219 = vmul.f32 %v216, 0.01
  %v220 = vsel %vm218, %v216, %v219
  %v221 = vld [vmem:[%s7] sm:$0xff]
  %v222 = vld [vmem:[%s7 + $0x8] sm:$0xff]
  %v223 = vld [vmem:[%s7 + $0x10] sm:$0xff]
  %v224 = vld [vmem:[%s7 + $0x18] sm:$0xff]
  %v225 = vld [vmem:[%s7 + $0x20] sm:$0xff]
  %v226 = vld [vmem:[%s7 + $0x28] sm:$0xff]
  %v227 = vld [vmem:[%s7 + $0x30] sm:$0x3]
  %v228 = vld [vmem:[#allocation2] sm:$0x1]
  %v230 = vperm.slane %v228, 0
  %vm232 = vcmask 408576
  %v234 = vsel %vm232, %v220, 0
  %vm236 = vcmask 1041408
  %v238 = vsel %vm236, %v227, 0
  %240 = vmatpush.msra.mxu0 0.0
  %241 = vmatpush.msra.mxu0 0.0
  %242 = vmatpush.msra.mxu0 0.0
  %243 = vmatpush.msra.mxu0 0.0
  %244 = vmatpush.msra.mxu0 0.0
  %245 = vmatpush.msra.mxu0 0.0
  %246 = vmatpush.msra.mxu0 0.0
  %247 = vmatpush.msra.mxu0 0.0
  %248 = vmatpush.msra.mxu0 0.0
  %249 = vmatpush.msra.mxu0 %v238
  %250 = vmatpush.msra.mxu0 %v226
  %251 = vmatpush.msra.mxu0 %v225
  %252 = vmatpush.msra.mxu0 %v224
  %253 = vmatpush.msra.mxu0 %v223
  %254 = vmatpush.msra.mxu0 %v222
  %255 = vmatpush.msra.mxu0 %v221
  %256 = vmatmul.f32.gmra.mxu0 %v234
  %v257 = vpop.f32.mrf.mxu0
  %v258 = vadd.f32 %v230, %v257
  %259 = vdwg.mxu0
  %v260 = vld [vmem:[%s9] sm:$0xff]
  %v261 = vld [vmem:[%s9 + $0x8] sm:$0xff]
  %v262 = vld [vmem:[%s9 + $0x10] sm:$0xff]
  %v263 = vld [vmem:[%s9 + $0x18] sm:$0xff]
  %v264 = vld [vmem:[%s9 + $0x20] sm:$0xff]
  %v265 = vld [vmem:[%s9 + $0x28] sm:$0xff]
  %v266 = vld [vmem:[%s9 + $0x30] sm:$0xff]
  %v267 = vld [vmem:[%s9 + $0x38] sm:$0xff]
  %v268 = vld [vmem:[%s10] sm:$0x1]
  %v270 = vperm.slane %v268, 0
  %272 = vmatpush.msra.mxu0 0.0
  %273 = vmatpush.msra.mxu0 0.0
  %274 = vmatpush.msra.mxu0 0.0
  %275 = vmatpush.msra.mxu0 0.0
  %276 = vmatpush.msra.mxu0 0.0
  %277 = vmatpush.msra.mxu0 0.0
  %278 = vmatpush.msra.mxu0 0.0
  %279 = vmatpush.msra.mxu0 0.0
  %280 = vmatpush.msra.mxu0 %v267
  %281 = vmatpush.msra.mxu0 %v266
  %282 = vmatpush.msra.mxu0 %v265
  %283 = vmatpush.msra.mxu0 %v264
  %284 = vmatpush.msra.mxu0 %v263
  %285 = vmatpush.msra.mxu0 %v262
  %286 = vmatpush.msra.mxu0 %v261
  %287 = vmatpush.msra.mxu0 %v260
  %288 = vmatmul.f32.gmra.mxu0 %v196
  %v289 = vpop.f32.mrf.mxu0
  %v290 = vadd.f32 %v270, %v289
  %291 = vdwg.mxu0
  %vm292 = vcmask 130048
  %293 = vst.msk [vmem:[%s11] sm:$0xff] %vm292, %v290
  %295 = vrot.lane.b32.xlu0 %v258, 16
  %v296 = vpop.permute.xlu0 %295
  %vm298 = vcmask 138368
  %299 = vst.msk [vmem:[%s11] sm:$0xff] %vm298, %v296
  // Predicated region
  $region46: #{nnv2_forward.1} parent=0 // pred_check
    _
  $region47: #{nnv2_forward.1} parent=0 // pred_check_branch
    %301 = sbr.rel (0) target = $region49
  $region48: #{nnv2_forward.1} parent=0 // pred_region
    _
  $region49: #{nnv2_forward.1} parent=0 // pred_fallthru
    _
  // Predicated region
  $region50: #{nnv2_forward.1} parent=0 // pred_check
    _
  $region51: #{nnv2_forward.1} parent=0 // pred_check_branch
    %303 = sbr.rel (0) target = $region53
  $region52: #{nnv2_forward.1} parent=0 // pred_region
    _
  $region53: #{nnv2_forward.1} parent=0 // pred_fallthru
    _

</llo_original>
